<compile_context>
chip_gen: v7x
topology: tpu7x:2x2x1
jax: 0.10.0
libtpu: 0.0.40
codegen_flags: <defaults>
</compile_context>

<pallas_src>
import math

import jax
import jax.numpy as jnp
from jax.experimental import pallas as pl
from jax.experimental.pallas import tpu as pltpu


# ------------------------------- Pallas kernel -------------------------------
def add_pe_kernel(x_ref, pe_ref, o_ref):
    # x_ref: (B, tile_n), pe_ref: (1, tile_n) -> broadcast add over batch sublanes.
    o_ref[...] = x_ref[...] + pe_ref[...]


# ------------------------------ PE table (init) -------------------------------
def make_positional_encoding_table(embed_dim, max_len=5000, dtype=jnp.float32):
    """Matches the PyTorch buffer: pe[:, 0::2] = sin, pe[:, 1::2] = cos."""
    assert embed_dim % 2 == 0, "embed_dim must be even (same constraint as reference)"
    position = jnp.arange(max_len, dtype=jnp.float32)[:, None]              # (L, 1)
    div_term = jnp.exp(
        jnp.arange(0, embed_dim, 2, dtype=jnp.float32)
        * -(math.log(10000.0) / embed_dim))                                 # (E/2,)
    ang = position * div_term                                               # (L, E/2)
    # Interleave sin/cos along features -> [sin0, cos0, sin1, cos1, ...]
    pe = jnp.stack([jnp.sin(ang), jnp.cos(ang)], axis=-1).reshape(max_len, embed_dim)
    return pe.astype(dtype)


def prepare_pe_flat(pe_table, seq_len, dtype):
    """Hoisted out of the per-call path: slice to T rows, flatten to (1, T*E),
    pre-cast to the activation dtype. Do this once per (T, dtype)."""
    max_len, embed_dim = pe_table.shape
    assert seq_len <= max_len, "sequence length exceeds max_len of the PE table"
    return pe_table[:seq_len].reshape(1, seq_len * embed_dim).astype(dtype)


# ------------------------------- tile selection -------------------------------
def _pick_tile_n(n, rows, itemsize, target_block_bytes=2 << 20):
    """Largest multiple-of-128 divisor of n (n % 128 == 0) whose (rows, tile)
    f32/bf16 block stays near the byte budget. Keeps double-buffered in+out+pe
    comfortably inside v5e's 16 MiB scoped VMEM and v7x's 32 MiB scoped VMEM."""
    budget_cols = max(128, (target_block_bytes // max(1, rows * itemsize)) // 128 * 128)
    tile = min(n, budget_cols)
    tile = max(128, (tile // 128) * 128)
    while tile > 128 and n % tile != 0:
        tile -= 128
    return tile


# --------------------------------- wrapper -----------------------------------
def positional_encoding(x, pe_flat):
    """x: (B, T, E); pe_flat: (1, T*E) pre-sliced/flattened/cast PE slice.
    Returns x + pe (same semantics as the PyTorch forward)."""
    B, T, E = x.shape
    N = T * E
    assert pe_flat.shape == (1, N), "pe_flat must be the pre-flattened (1, T*E) slice"
    assert pe_flat.dtype == x.dtype, "pre-cast pe_flat to x.dtype (hoisted, once)"

    x_flat = x.reshape(B, N)  # metadata-only reshape of contiguous row-major data

    common = dict(
        out_shape=jax.ShapeDtypeStruct((B, N), x.dtype),
        # Output aliases the flattened activation: no second full-size HBM buffer.
        input_output_aliases={0: 0},
    )

    if N % 128 == 0:
        tile_n = _pick_tile_n(N, B, jnp.dtype(x.dtype).itemsize)
        out_flat = pl.pallas_call(
            add_pe_kernel,
            grid_spec=pltpu.PrefetchScalarGridSpec(
                num_scalar_prefetch=0,
                grid=(N // tile_n,),
                in_specs=[
                    pl.BlockSpec((B, tile_n), lambda j: (0, j)),
                    pl.BlockSpec((1, tile_n), lambda j: (0, j)),
                ],
                out_specs=pl.BlockSpec((B, tile_n), lambda j: (0, j)),
            ),
            compiler_params=pltpu.CompilerParams(
                dimension_semantics=("parallel",)),
            **common,
        )(x_flat, pe_flat)
    else:
        # Unaligned T*E (e.g. E=32 with T % 4 != 0): single full-extent block —
        # full array dims are exempt from the (8,128) divisibility rule and we
        # avoid an extra per-call pad copy.
        # TODO(synk): add a padded tiled path if unaligned shapes ever get large.
        out_flat = pl.pallas_call(
            add_pe_kernel,
            in_specs=[
                pl.BlockSpec((B, N), lambda: (0, 0)),
                pl.BlockSpec((1, N), lambda: (0, 0)),
            ],
            out_specs=pl.BlockSpec((B, N), lambda: (0, 0)),
            **common,
        )(x_flat, pe_flat)

    return out_flat.reshape(B, T, E)


# ----------------------------------- main ------------------------------------
if __name__ == "__main__":
    B, T, E = 2, 8, 32
    MAX_LEN = 5000

    key = jax.random.PRNGKey(0)
    x = jax.random.normal(key, (B, T, E), jnp.float32)

    # Init-time constants (equivalent of the module's register_buffer).
    pe_table = make_positional_encoding_table(E, max_len=MAX_LEN)
    pe_flat = prepare_pe_flat(pe_table, T, x.dtype)   # hoisted: once per (T, dtype)

    # Pure-JAX reference computed BEFORE the kernel (kernel aliases its input).
    ref = x + pe_table[None, :T, :]

    out = positional_encoding(x, pe_flat)
    jax.block_until_ready(out)

    assert out.shape == (B, T, E)
    assert jnp.allclose(out, ref, atol=1e-6, rtol=1e-6)

    print("KERNEL_OK")
</pallas_src>

<mosaic_0001>
module attributes {stable_mosaic.version = 11 : i64} {
  func.func @add_pe_kernel(%arg0: i32, %arg1: memref<2x256xf32, #tpu.memory_space<vmem>>, %arg2: memref<1x256xf32, #tpu.memory_space<vmem>>, %arg3: memref<2x256xf32, #tpu.memory_space<vmem>>) attributes {dimension_semantics = [#tpu.dimension_semantics<parallel>], iteration_bounds = array<i64: 1>, scalar_prefetch = 0 : i64, scratch_operands = 0 : i64, tpu.core_type = #tpu.core_type<tc>, window_params = [{transform_indices = @transform_0, window_bounds = array<i64: 2, 256>}, {transform_indices = @transform_1, window_bounds = array<i64: 1, 256>}, {transform_indices = @transform_2, window_bounds = array<i64: 2, 256>}]} {
    %c0 = arith.constant 0 : index
    %c0_0 = arith.constant 0 : index
    %0 = vector.load %arg1[%c0, %c0_0] : memref<2x256xf32, #tpu.memory_space<vmem>>, vector<2x256xf32>
    %c0_1 = arith.constant 0 : index
    %c0_2 = arith.constant 0 : index
    %1 = vector.load %arg2[%c0_1, %c0_2] : memref<1x256xf32, #tpu.memory_space<vmem>>, vector<1x256xf32>
    %2 = vector.broadcast %1 : vector<1x256xf32> to vector<2x256xf32>
    %3 = arith.addf %0, %2 : vector<2x256xf32>
    %c0_3 = arith.constant 0 : index
    %c0_4 = arith.constant 0 : index
    %4 = vector.load %arg3[%c0_3, %c0_4] : memref<2x256xf32, #tpu.memory_space<vmem>>, vector<2x256xf32>
    tpu.vector_store %arg3[%c0_3, %c0_4], %3 {strides = array<i32>} : memref<2x256xf32, #tpu.memory_space<vmem>>, vector<2x256xf32>,
    return
  }
  func.func @transform_0(%arg0: i32) -> (i32, i32) {
    %c0_i32 = arith.constant 0 : i32
    %c0_i32_0 = arith.constant 0 : i32
    return %c0_i32, %arg0 : i32, i32
  }
  func.func @transform_1(%arg0: i32) -> (i32, i32) {
    %c0_i32 = arith.constant 0 : i32
    %c0_i32_0 = arith.constant 0 : i32
    return %c0_i32, %arg0 : i32, i32
  }
  func.func @transform_2(%arg0: i32) -> (i32, i32) {
    %c0_i32 = arith.constant 0 : i32
    %c0_i32_0 = arith.constant 0 : i32
    return %c0_i32, %arg0 : i32, i32
  }
}

</mosaic_0001>

<llo_original>
// kernel: tpu_custom_call.1
$region0: #{tpu_custom_call.1}
  #allocation0 [shape = 'u32[]', space=smem, size = 0x4, offset = 0x4, fixed_abs, tag = 'smem constant byte address 0x4 - core index']
  #allocation1 [shape = 'u32[144,128]{1,0:T(1,128)}', space=vmem, size = 0x12000, scoped, tag = 'internal scratch']
  %s0 = inlined_call_operand.hbm [shape: f32[2,256], index: 0, kind: input, shape index: {}, may-alias: {0,2}]
  %s1 = inlined_call_operand.vmem [shape: f32[1,256], index: 1, kind: input, shape index: {}]
  %s2 = inlined_call_operand.hbm [shape: f32[2,256], index: 2, kind: output, shape index: {}, may-alias: {0,2}]
  %s3 = sld [smem:[#allocation0]]
  $region22: #{tpu_custom_call.1} parent=0
    _
  %s5 = ssub.s32 1, %s3
  %s6 = scalar_select 0, %s5, %s3
  $region1: #{tpu_custom_call.1} parent=0
    #allocation2 [shape = 'u8[2048]{0}', space=vmem, size = 0x800, scoped, tag = 'input window, operand 0, single buffered']
    #allocation3 [shape = 's32[1]{0}', space=sflag, size = 0x4, scoped, tag = 'scoped memory for tpu_custom_call.1']
    #allocation4 [shape = 's32[1]{0}', space=sflag, size = 0x4, scoped, tag = 'scoped memory for tpu_custom_call.1']
    #allocation5 [shape = 'u8[2048]{0}', space=vmem, size = 0x800, scoped, tag = 'output window, operand 0, single buffered']
    %7 = vsyncpa [#allocation3], 0
    %8 = vsyncpa [#allocation4], 0
    // Predicated region
    $region2: #{tpu_custom_call.1} parent=1 // pred_check
      _
    $region3: #{tpu_custom_call.1} parent=1 // pred_check_branch
      %10 = sbr.rel (0) target = $region5
    $region4: #{tpu_custom_call.1} parent=1 // pred_region
      %s12 = ssub.s32 64, 64
      %13 = vsyncadd [#allocation3], %s12
      %s15 = sshll.u32 [#allocation2], 4
      %s16 = int_to_ptr.vmem [resolvable:$true] %s15
      %18 = dma.hbm_to_vmem [thread:$0]  %s0, 64, %s16, [#allocation3]
    $region5: #{tpu_custom_call.1} parent=1 // pred_fallthru
      _
    // Predicated region
    $region6: #{tpu_custom_call.1} parent=1 // pred_check
      _
    $region7: #{tpu_custom_call.1} parent=1 // pred_check_branch
      %20 = sbr.rel (0) target = $region9
    $region8: #{tpu_custom_call.1} parent=1 // pred_region
      _
    $region9: #{tpu_custom_call.1} parent=1 // pred_fallthru
      _
    // Predicated region
    $region10: #{tpu_custom_call.1} parent=1 // pred_check
      _
    $region11: #{tpu_custom_call.1} parent=1 // pred_check_branch
      %22 = sbr.rel (0) target = $region13
    $region12: #{tpu_custom_call.1} parent=1 // pred_region
      %23 = dma.done [#allocation3], 64
    $region13: #{tpu_custom_call.1} parent=1 // pred_fallthru
      _
    %v24 = vld [vmem:[#allocation2] sm:$0xf]
    %v25 = vld [vmem:[%s1] sm:$0x3]
    %v27 = vlaneseq
    %v28 = vshrl.u32 %v27, 7
    %v29 = vsub.s32 0, %v28
    %v30 = vrot.slane %v25, %v29
    %v31 = vlaneseq
    %v32 = vshrl.u32 %v31, 7
    %v33 = vsub.s32 1, %v32
    %v34 = vrot.slane %v25, %v33
    %v35 = vcombine.low %v30, %v34
    %v37 = vunpack.c.l.s4 1983009808
    %v38 = vunpack.c.0.s8 %v37
    %v39 = vlaneseq
    %v40 = vshrl.u32 %v39, 7
    %v41 = vsub.s32 %v38, %v40
    %v42 = vrot.slane %v35, %v41
    %v44 = vadd.f32 %v24, %v42
    %45 = vst [vmem:[#allocation5] sm:$0xf] %v44
    // Predicated region
    $region14: #{tpu_custom_call.1} parent=1 // pred_check
      _
    $region15: #{tpu_custom_call.1} parent=1 // pred_check_branch
      %47 = sbr.rel (0) target = $region17
    $region16: #{tpu_custom_call.1} parent=1 // pred_region
      %s49 = ssub.s32 64, 64
      %50 = vsyncadd [#allocation4], %s49
      %s52 = sshll.u32 [#allocation5], 4
      %s53 = int_to_ptr.vmem [resolvable:$true] %s52
      %55 = dma.vmem_to_hbm [thread:$0]  %s53, 64, %s2, [#allocation4]
    $region17: #{tpu_custom_call.1} parent=1 // pred_fallthru
      _
    // Predicated region
    $region18: #{tpu_custom_call.1} parent=1 // pred_check
      _
    $region19: #{tpu_custom_call.1} parent=1 // pred_check_branch
      %57 = sbr.rel (0) target = $region21
    $region20: #{tpu_custom_call.1} parent=1 // pred_region
      %58 = dma.done [#allocation4], 64
    $region21: #{tpu_custom_call.1} parent=1 // pred_fallthru
      _
    %59 = vsyncpa [#allocation3], 1
    %60 = vsyncpa [#allocation4], 1

</llo_original>
